<compile_context>
chip_gen: v7x
topology: tpu7x:2x2x1
jax: 0.10.0
libtpu: 0.0.40
codegen_flags: <defaults>
</compile_context>

<pallas_src>
import math

import jax
import jax.numpy as jnp
import numpy as np
from jax.experimental import pallas as pl
from jax.experimental.pallas import tpu as pltpu

_LANE = 512          # lane-dense width (multiple of 128)
_MAX_ROW_TILE = 1024  # 1024 x 512 x 4B = 2 MiB per input tile


def _round_up(x, m):
    return ((x + m - 1) // m) * m


def _mask_iou_partials_kernel(pred_ref, gt_ref, part_ref):
    """One grid step: sigmoid + elementwise products, folded to (8, LANE) partials."""
    p = jax.nn.sigmoid(pred_ref[...].astype(jnp.float32))
    g = gt_ref[...].astype(jnp.float32)

    rt, lane = p.shape

    def fold(x):
        # (rt, lane) -> (rt // 8, 8, lane) keeps sublane/lane indices unchanged
        # (layout-free regrouping), so the axis-0 sum is pure VPU vreg adds.
        return x.reshape(rt // 8, 8, lane).sum(axis=0)

    part_ref[0] = fold(p * g)   # intersection partial
    part_ref[1] = fold(p)       # sum(sigmoid(pred)) partial
    part_ref[2] = fold(g)       # sum(gt) partial


def mask_iou_loss(pred_mask, ground_truth_mask, pred_iou):
    """Pallas implementation of MaskIoULoss.forward (global IoU + MSE vs pred_iou)."""
    assert pred_mask.shape == ground_truth_mask.shape, (
        "pred_mask and ground_truth_mask should have the same shape.")

    n = math.prod(pred_mask.shape)

    # Lane-dense slab geometry: (rows, _LANE), rows a multiple of 8 and of the
    # row tile so every block is full (no partial / garbage reads).
    rows = _round_up(max(pl.cdiv(n, _LANE), 1), 8)
    if rows <= _MAX_ROW_TILE:
        row_tile = rows
    else:
        row_tile = _MAX_ROW_TILE
        rows = _round_up(rows, row_tile)
    grid_steps = rows // row_tile
    padded_n = rows * _LANE

    pred_flat = pred_mask.reshape(-1)
    gt_flat = ground_truth_mask.reshape(-1)
    pad = padded_n - n
    if pad:
        # Padding contributes exactly 0 to all three sums:
        #   sigmoid(most-negative finite) == 0.0 ; gt pad == 0.0
        neg = jnp.finfo(pred_flat.dtype).min
        pred_flat = jnp.pad(pred_flat, (0, pad), constant_values=neg)
        gt_flat = jnp.pad(gt_flat, (0, pad), constant_values=0)

    pred2d = pred_flat.reshape(rows, _LANE)
    gt2d = gt_flat.reshape(rows, _LANE)

    partials = pl.pallas_call(
        _mask_iou_partials_kernel,
        out_shape=jax.ShapeDtypeStruct((3, grid_steps * 8, _LANE), jnp.float32),
        grid_spec=pltpu.PrefetchScalarGridSpec(
            num_scalar_prefetch=0,
            grid=(grid_steps,),
            in_specs=[
                pl.BlockSpec((row_tile, _LANE), lambda i: (i, 0)),  # pred rows
                pl.BlockSpec((row_tile, _LANE), lambda i: (i, 0)),  # gt rows
            ],
            out_specs=pl.BlockSpec((3, 8, _LANE), lambda i: (0, i, 0)),
        ),
        compiler_params=pltpu.CompilerParams(
            dimension_semantics=("parallel",)),
    )(pred2d, gt2d)

    # Tiny scalar epilogue over the small partial slab (per reviewer guidance).
    eps = jnp.float32(1e-07)
    intersection = jnp.sum(partials[0])
    total_p = jnp.sum(partials[1])
    total_g = jnp.sum(partials[2])
    union = total_p + total_g - intersection
    iou = (intersection + eps) / (union + eps)
    diff = iou - pred_iou.astype(jnp.float32)
    return jnp.mean(diff * diff)


def _reference(pred_mask, ground_truth_mask, pred_iou):
    p = jax.nn.sigmoid(pred_mask.astype(jnp.float32))
    g = ground_truth_mask.astype(jnp.float32)
    inter = jnp.sum(p * g)
    union = jnp.sum(p) + jnp.sum(g) - inter
    iou = (inter + 1e-07) / (union + 1e-07)
    return jnp.mean((iou - pred_iou.astype(jnp.float32)) ** 2)


if __name__ == "__main__":
    key = jax.random.PRNGKey(0)
    k1, k2, k3 = jax.random.split(key, 3)

    B, C, H, W = 2, 1, 16, 16
    pred_mask = jax.random.normal(k1, (B, C, H, W), dtype=jnp.float32)
    ground_truth_mask = (
        jax.random.uniform(k2, (B, C, H, W), dtype=jnp.float32) > 0.5
    ).astype(jnp.float32)
    pred_iou = jax.random.uniform(k3, (B, 1), dtype=jnp.float32)

    loss = jax.jit(mask_iou_loss)(pred_mask, ground_truth_mask, pred_iou)
    loss = jax.block_until_ready(loss)

    ref = _reference(pred_mask, ground_truth_mask, pred_iou)
    np.testing.assert_allclose(np.asarray(loss), np.asarray(ref),
                               rtol=1e-5, atol=1e-6)
    print("KERNEL_OK")
</pallas_src>

<mosaic_0001>
module attributes {stable_mosaic.version = 11 : i64} {
  func.func @_mask_iou_partials_kernel(%arg0: i32, %arg1: memref<8x512xf32, #tpu.memory_space<vmem>>, %arg2: memref<8x512xf32, #tpu.memory_space<vmem>>, %arg3: memref<3x8x512xf32, #tpu.memory_space<vmem>>) attributes {dimension_semantics = [#tpu.dimension_semantics<parallel>], iteration_bounds = array<i64: 1>, scalar_prefetch = 0 : i64, scratch_operands = 0 : i64, tpu.core_type = #tpu.core_type<tc>, window_params = [{transform_indices = @transform_0, window_bounds = array<i64: 8, 512>}, {transform_indices = @transform_1, window_bounds = array<i64: 8, 512>}, {transform_indices = @transform_2, window_bounds = array<i64: 3, 8, 512>}]} {
    %c0 = arith.constant 0 : index
    %c0_0 = arith.constant 0 : index
    %0 = vector.load %arg1[%c0, %c0_0] : memref<8x512xf32, #tpu.memory_space<vmem>>, vector<8x512xf32>
    %1 = arith.negf %0 : vector<8x512xf32>
    %2 = math.exp %1 : vector<8x512xf32>
    %cst = arith.constant 1.000000e+00 : f32
    %3 = vector.broadcast %cst : f32 to vector<8x512xf32>
    %4 = arith.addf %3, %2 : vector<8x512xf32>
    %5 = arith.divf %3, %4 : vector<8x512xf32>
    %c0_1 = arith.constant 0 : index
    %c0_2 = arith.constant 0 : index
    %6 = vector.load %arg2[%c0_1, %c0_2] : memref<8x512xf32, #tpu.memory_space<vmem>>, vector<8x512xf32>
    %7 = arith.mulf %5, %6 : vector<8x512xf32>
    %8 = vector.shape_cast %7 : vector<8x512xf32> to vector<1x8x512xf32>
    %cst_3 = arith.constant dense<0.000000e+00> : vector<8x512xf32>
    %9 = vector.multi_reduction <add>, %8, %cst_3 [0] : vector<1x8x512xf32> to vector<8x512xf32>
    %c0_4 = arith.constant 0 : index
    %c0_5 = arith.constant 0 : index
    %c0_6 = arith.constant 0 : index
    %10 = vector.load %arg3[%c0_4, %c0_5, %c0_6] : memref<3x8x512xf32, #tpu.memory_space<vmem>>, vector<1x8x512xf32>
    %11 = vector.shape_cast %10 : vector<1x8x512xf32> to vector<8x512xf32>
    %12 = vector.shape_cast %9 : vector<8x512xf32> to vector<1x8x512xf32>
    tpu.vector_store %arg3[%c0_4, %c0_5, %c0_6], %12 {strides = array<i32>} : memref<3x8x512xf32, #tpu.memory_space<vmem>>, vector<1x8x512xf32>,
    %13 = vector.shape_cast %5 : vector<8x512xf32> to vector<1x8x512xf32>
    %cst_7 = arith.constant dense<0.000000e+00> : vector<8x512xf32>
    %14 = vector.multi_reduction <add>, %13, %cst_7 [0] : vector<1x8x512xf32> to vector<8x512xf32>
    %c1 = arith.constant 1 : index
    %c0_8 = arith.constant 0 : index
    %c0_9 = arith.constant 0 : index
    %15 = vector.load %arg3[%c1, %c0_8, %c0_9] : memref<3x8x512xf32, #tpu.memory_space<vmem>>, vector<1x8x512xf32>
    %16 = vector.shape_cast %15 : vector<1x8x512xf32> to vector<8x512xf32>
    %17 = vector.shape_cast %14 : vector<8x512xf32> to vector<1x8x512xf32>
    tpu.vector_store %arg3[%c1, %c0_8, %c0_9], %17 {strides = array<i32>} : memref<3x8x512xf32, #tpu.memory_space<vmem>>, vector<1x8x512xf32>,
    %18 = vector.shape_cast %6 : vector<8x512xf32> to vector<1x8x512xf32>
    %cst_10 = arith.constant dense<0.000000e+00> : vector<8x512xf32>
    %19 = vector.multi_reduction <add>, %18, %cst_10 [0] : vector<1x8x512xf32> to vector<8x512xf32>
    %c2 = arith.constant 2 : index
    %c0_11 = arith.constant 0 : index
    %c0_12 = arith.constant 0 : index
    %20 = vector.load %arg3[%c2, %c0_11, %c0_12] : memref<3x8x512xf32, #tpu.memory_space<vmem>>, vector<1x8x512xf32>
    %21 = vector.shape_cast %20 : vector<1x8x512xf32> to vector<8x512xf32>
    %22 = vector.shape_cast %19 : vector<8x512xf32> to vector<1x8x512xf32>
    tpu.vector_store %arg3[%c2, %c0_11, %c0_12], %22 {strides = array<i32>} : memref<3x8x512xf32, #tpu.memory_space<vmem>>, vector<1x8x512xf32>,
    return
  }
  func.func @transform_0(%arg0: i32) -> (i32, i32) {
    %c0_i32 = arith.constant 0 : i32
    %c0_i32_0 = arith.constant 0 : i32
    return %arg0, %c0_i32 : i32, i32
  }
  func.func @transform_1(%arg0: i32) -> (i32, i32) {
    %c0_i32 = arith.constant 0 : i32
    %c0_i32_0 = arith.constant 0 : i32
    return %arg0, %c0_i32 : i32, i32
  }
  func.func @transform_2(%arg0: i32) -> (i32, i32, i32) {
    %c0_i32 = arith.constant 0 : i32
    %c0_i32_0 = arith.constant 0 : i32
    %c0_i32_1 = arith.constant 0 : i32
    return %c0_i32, %arg0, %c0_i32_0 : i32, i32, i32
  }
}

</mosaic_0001>

<llo_original>
// kernel: mask_iou_loss.1
$region0: #{mask_iou_loss.1}
  #allocation0 [shape = 'u32[]', space=smem, size = 0x4, offset = 0x4, fixed_abs, tag = 'smem constant byte address 0x4 - core index']
  #allocation1 [shape = 'u32[144,128]{1,0:T(1,128)}', space=vmem, size = 0x12000, scoped, tag = 'internal scratch']
  %s0 = inlined_call_operand.vmem [shape: f32[8,512], index: 0, kind: input, shape index: {}]
  %s1 = inlined_call_operand.vmem [shape: f32[8,512], index: 1, kind: input, shape index: {}]
  %s2 = inlined_call_operand.vmem [shape: f32[3,8,512], index: 2, kind: output, shape index: {}]
  %s3 = sld [smem:[#allocation0]]
  $region18: #{mask_iou_loss.1} parent=0
    _
  %s5 = ssub.s32 1, %s3
  %s6 = scalar_select 0, %s5, %s3
  // Predicated region
  $region2: #{mask_iou_loss.1} parent=0 // pred_check
    _
  $region3: #{mask_iou_loss.1} parent=0 // pred_check_branch
    %8 = sbr.rel (0) target = $region5
  $region4: #{mask_iou_loss.1} parent=0 // pred_region
    _
  $region5: #{mask_iou_loss.1} parent=0 // pred_fallthru
    _
  // Predicated region
  $region6: #{mask_iou_loss.1} parent=0 // pred_check
    _
  $region7: #{mask_iou_loss.1} parent=0 // pred_check_branch
    %10 = sbr.rel (0) target = $region9
  $region8: #{mask_iou_loss.1} parent=0 // pred_region
    _
  $region9: #{mask_iou_loss.1} parent=0 // pred_fallthru
    _
  %v11 = vld [vmem:[%s0] sm:$0xff]
  %v12 = vld [vmem:[%s0 + $0x8] sm:$0xff]
  %v13 = vld [vmem:[%s0 + $0x10] sm:$0xff]
  %v14 = vld [vmem:[%s0 + $0x18] sm:$0xff]
  %v15 = vxor.u32 %v11, 2147483648
  %v16 = vxor.u32 %v12, 2147483648
  %v17 = vxor.u32 %v13, 2147483648
  %v18 = vxor.u32 %v14, 2147483648
  %v19 = vmul.f32 %v15, 1.442695
  %v20 = vpow.pop %v19
  %v21 = vmul.f32 %v16, 1.442695
  %v22 = vpow.pop %v21
  %v23 = vmul.f32 %v17, 1.442695
  %v24 = vpow.pop %v23
  %v25 = vmul.f32 %v18, 1.442695
  %v26 = vpow.pop %v25
  %v27 = vadd.f32 %v20, 1.0
  %v28 = vadd.f32 %v22, 1.0
  %v29 = vadd.f32 %v24, 1.0
  %v30 = vadd.f32 %v26, 1.0
  %v31 = vrcp.pop %v27
  %v32 = vmul.f32 1.0, %v31
  %v33 = vrcp.pop %v28
  %v34 = vmul.f32 1.0, %v33
  %v35 = vrcp.pop %v29
  %v36 = vmul.f32 1.0, %v35
  %v37 = vrcp.pop %v30
  %v38 = vmul.f32 1.0, %v37
  %v39 = vld [vmem:[%s1] sm:$0xff]
  %v40 = vld [vmem:[%s1 + $0x8] sm:$0xff]
  %v41 = vld [vmem:[%s1 + $0x10] sm:$0xff]
  %v42 = vld [vmem:[%s1 + $0x18] sm:$0xff]
  %v43 = vmul.f32 %v32, %v39
  %v44 = vmul.f32 %v34, %v40
  %v45 = vmul.f32 %v36, %v41
  %v46 = vmul.f32 %v38, %v42
  %v47 = vadd.f32 %v43, 0.0
  %v48 = vadd.f32 %v44, 0.0
  %v49 = vadd.f32 %v45, 0.0
  %v50 = vadd.f32 %v46, 0.0
  %51 = vst [vmem:[%s2] sm:$0xff] %v47
  %52 = vst [vmem:[%s2 + $0x8] sm:$0xff] %v48
  %53 = vst [vmem:[%s2 + $0x10] sm:$0xff] %v49
  %54 = vst [vmem:[%s2 + $0x18] sm:$0xff] %v50
  %v55 = vadd.f32 %v32, 0.0
  %v56 = vadd.f32 %v34, 0.0
  %v57 = vadd.f32 %v36, 0.0
  %v58 = vadd.f32 %v38, 0.0
  %s59 = scalar_lea.vmem %s2, 32
  %60 = vst [vmem:[%s59] sm:$0xff] %v55
  %61 = vst [vmem:[%s59 + $0x8] sm:$0xff] %v56
  %62 = vst [vmem:[%s59 + $0x10] sm:$0xff] %v57
  %63 = vst [vmem:[%s59 + $0x18] sm:$0xff] %v58
  %v64 = vadd.f32 %v39, 0.0
  %v65 = vadd.f32 %v40, 0.0
  %v66 = vadd.f32 %v41, 0.0
  %v67 = vadd.f32 %v42, 0.0
  %s68 = scalar_lea.vmem %s2, 64
  %69 = vst [vmem:[%s68] sm:$0xff] %v64
  %70 = vst [vmem:[%s68 + $0x8] sm:$0xff] %v65
  %71 = vst [vmem:[%s68 + $0x10] sm:$0xff] %v66
  %72 = vst [vmem:[%s68 + $0x18] sm:$0xff] %v67
  // Predicated region
  $region10: #{mask_iou_loss.1} parent=0 // pred_check
    _
  $region11: #{mask_iou_loss.1} parent=0 // pred_check_branch
    %74 = sbr.rel (0) target = $region13
  $region12: #{mask_iou_loss.1} parent=0 // pred_region
    _
  $region13: #{mask_iou_loss.1} parent=0 // pred_fallthru
    _
  // Predicated region
  $region14: #{mask_iou_loss.1} parent=0 // pred_check
    _
  $region15: #{mask_iou_loss.1} parent=0 // pred_check_branch
    %76 = sbr.rel (0) target = $region17
  $region16: #{mask_iou_loss.1} parent=0 // pred_region
    _
  $region17: #{mask_iou_loss.1} parent=0 // pred_fallthru
    _

</llo_original>
